<compile_context>
chip_gen: v5e
topology: v5e:2x2
jax: 0.10.0
libtpu: 0.0.40
codegen_flags: <defaults>
</compile_context>

<pallas_src>
import functools

import jax
import jax.numpy as jnp
from jax import lax
from jax.experimental import pallas as pl
from jax.experimental.pallas import tpu as pltpu


# ----------------------------------------------------------------------------
# Fused Pallas kernel: sampling + full MLP forward
# ----------------------------------------------------------------------------
def _bnn_fused_kernel(*refs, n_layers):
    """Ref layout:
      inputs : x, flat_mean, flat_log_std, flat_eps,
               then per layer: mean_w, log_std_w, eps_w, mean_b, log_std_b, eps_b
      outputs: out (last layer pre-activation), sampled_flat [1, nw]
    """
    L = n_layers
    x_ref = refs[0]
    fm_ref, fls_ref, fe_ref = refs[1:4]
    layer_in = refs[4:4 + 6 * L]
    out_ref = refs[4 + 6 * L]
    sflat_ref = refs[5 + 6 * L]

    # Flat sampled weights output (elementwise; exp -> EUP slot, essentially
    # free when overlapped with the MXU work below).
    sflat_ref[...] = fm_ref[...] + jnp.exp(fls_ref[...]) * fe_ref[...]

    x = x_ref[...].astype(jnp.float32)                       # [B, Din0]
    for li in range(L):
        mw, lsw, ew, mb, lsb, eb = layer_in[6 * li: 6 * li + 6]
        w = mw[...] + jnp.exp(lsw[...]) * ew[...]            # [Dout, Din]
        b = mb[...] + jnp.exp(lsb[...]) * eb[...]            # [1, Dout]
        # y = x @ W.T + b, written as a contraction over the LAST dim of both
        # operands so no transpose of the weight tile is materialized.
        y = lax.dot_general(
            x, w,
            dimension_numbers=(((1,), (1,)), ((), ())),
            preferred_element_type=jnp.float32,
        ) + b
        if li == L - 1:
            # returned value is the last layer's PRE-activation
            out_ref[...] = y.astype(out_ref.dtype)
        else:
            x = jnp.maximum(y, 0.0)                          # fused ReLU


# ----------------------------------------------------------------------------
# Wrapper (glue under jit; single pallas_call)
# ----------------------------------------------------------------------------
def _full2d(shape):
    return pl.BlockSpec(shape, lambda i: (0, 0))


@functools.partial(jax.jit, static_argnames=("layer_sizes",))
def _bnn_wrapper_forward_jit(inputs, mean, log_std, eps, layer_sizes):
    L = len(layer_sizes)
    B, din0 = inputs.shape
    nw = mean.shape[0]
    f32 = jnp.float32

    flat_mean = mean.astype(f32).reshape(-1)       # [nw]
    flat_ls = log_std.astype(f32).reshape(-1)
    flat_eps = eps.astype(f32).reshape(-1)

    args = [
        inputs.astype(f32),
        flat_mean.reshape(1, nw),
        flat_ls.reshape(1, nw),
        flat_eps.reshape(1, nw),
    ]
    in_specs = [
        _full2d((B, din0)),
        _full2d((1, nw)), _full2d((1, nw)), _full2d((1, nw)),
    ]

    # Static per-layer slicing/reshaping of the flat parameter vectors, done
    # OUTSIDE the kernel (weights first, then biases, matching PyTorch's
    # unpack_sampled_weights).
    w_off = 0
    b_off = sum(m * n for m, n in layer_sizes)
    for m, n in layer_sizes:
        for src in (flat_mean, flat_ls, flat_eps):
            args.append(src[w_off:w_off + m * n].reshape(n, m))
            in_specs.append(_full2d((n, m)))
        for src in (flat_mean, flat_ls, flat_eps):
            args.append(src[b_off:b_off + n].reshape(1, n))
            in_specs.append(_full2d((1, n)))
        w_off += m * n
        b_off += n

    dout = layer_sizes[-1][1]
    out_shape = (
        jax.ShapeDtypeStruct((B, dout), f32),
        jax.ShapeDtypeStruct((1, nw), f32),
    )
    out_specs = (_full2d((B, dout)), _full2d((1, nw)))

    kernel = functools.partial(_bnn_fused_kernel, n_layers=L)
    outputs, sampled_flat = pl.pallas_call(
        kernel,
        out_shape=out_shape,
        grid=(1,),
        in_specs=in_specs,
        out_specs=out_specs,
        compiler_params=pltpu.CompilerParams(
            dimension_semantics=("arbitrary",)),
    )(*args)

    return outputs, sampled_flat.reshape(nw, 1)


def bnn_wrapper_forward(inputs, mean, log_std, eps, layer_sizes, N_samples=None):
    # N_samples is accepted but unused, exactly as in PyTorch BNN_wrapper.forward.
    layer_sizes = tuple(tuple(int(d) for d in ls) for ls in layer_sizes)
    return _bnn_wrapper_forward_jit(inputs, mean, log_std, eps, layer_sizes)


# ----------------------------------------------------------------------------
# Helpers (mirror the PyTorch module, used for the reference check)
# ----------------------------------------------------------------------------
def get_layer_sizes_from_arch(arch):
    return [[m, n] for m, n in zip(arch[:-1], arch[1:])]


def unpack_sampled_weights(sampled_flat, layer_sizes):
    """Mirrors BNN.unpack_sampled_weights: weights first (viewed [n, m]), then biases."""
    weights, biases = [], []
    idx = 0
    for m, n in layer_sizes:
        weights.append(sampled_flat[idx:idx + m * n].reshape(n, m))
        idx += m * n
    for m, n in layer_sizes:
        biases.append(sampled_flat[idx:idx + n])
        idx += n
    return weights, biases


# ----------------------------------------------------------------------------
# Main
# ----------------------------------------------------------------------------
if __name__ == "__main__":
    # small architecture: input 16 -> hidden 32 -> output 8
    arch = [16, 32, 8]
    layer_sizes = get_layer_sizes_from_arch(arch)
    num_weight_samples = sum((m + 1) * n for m, n in layer_sizes)

    key = jax.random.PRNGKey(0)
    k_mean, k_eps, k_x = jax.random.split(key, 3)

    # deterministic "parameters" (BNN_wrapper.__init__: mean ~ randn, log_std = 0)
    mean = jax.random.normal(k_mean, (num_weight_samples, 1), dtype=jnp.float32)
    log_std = jnp.zeros((num_weight_samples, 1), dtype=jnp.float32)
    # TODO(synk): torch.randn epsilon draw happens inside sample_weights(); here
    # the epsilons are passed in explicitly so the run is deterministic.
    eps = jax.random.normal(k_eps, (num_weight_samples, 1), dtype=jnp.float32)

    batch = 4
    inputs = jax.random.normal(k_x, (batch, arch[0]), dtype=jnp.float32)

    outputs, sampled_weights = bnn_wrapper_forward(
        inputs, mean, log_std, eps, layer_sizes, N_samples=5
    )
    jax.block_until_ready(outputs)
    jax.block_until_ready(sampled_weights)

    assert outputs.shape == (batch, arch[-1])
    assert sampled_weights.shape == (num_weight_samples, 1)

    # correctness check against a pure-JAX reference of the same math
    flat_ref = (mean + jnp.exp(log_std) * eps).reshape(-1)
    ws, bs = unpack_sampled_weights(flat_ref, layer_sizes)
    x_ref = inputs
    out_ref = None
    for w, b in zip(ws, bs):
        out_ref = x_ref @ w.T + b[None, :]
        x_ref = jnp.maximum(out_ref, 0.0)
    assert jnp.allclose(outputs, out_ref, atol=1e-5, rtol=1e-5)
    assert jnp.allclose(sampled_weights, flat_ref.reshape(-1, 1), atol=1e-6, rtol=1e-6)

    print("KERNEL_OK")
</pallas_src>

<mosaic_0001>
module attributes {stable_mosaic.version = 11 : i64} {
  func.func @_bnn_fused_kernel(%arg0: i32, %arg1: memref<4x16xf32, #tpu.memory_space<vmem>>, %arg2: memref<1x808xf32, #tpu.memory_space<vmem>>, %arg3: memref<1x808xf32, #tpu.memory_space<vmem>>, %arg4: memref<1x808xf32, #tpu.memory_space<vmem>>, %arg5: memref<32x16xf32, #tpu.memory_space<vmem>>, %arg6: memref<32x16xf32, #tpu.memory_space<vmem>>, %arg7: memref<32x16xf32, #tpu.memory_space<vmem>>, %arg8: memref<1x32xf32, #tpu.memory_space<vmem>>, %arg9: memref<1x32xf32, #tpu.memory_space<vmem>>, %arg10: memref<1x32xf32, #tpu.memory_space<vmem>>, %arg11: memref<8x32xf32, #tpu.memory_space<vmem>>, %arg12: memref<8x32xf32, #tpu.memory_space<vmem>>, %arg13: memref<8x32xf32, #tpu.memory_space<vmem>>, %arg14: memref<1x8xf32, #tpu.memory_space<vmem>>, %arg15: memref<1x8xf32, #tpu.memory_space<vmem>>, %arg16: memref<1x8xf32, #tpu.memory_space<vmem>>, %arg17: memref<4x8xf32, #tpu.memory_space<vmem>>, %arg18: memref<1x808xf32, #tpu.memory_space<vmem>>) attributes {dimension_semantics = [#tpu.dimension_semantics<arbitrary>], iteration_bounds = array<i64: 1>, scalar_prefetch = 0 : i64, scratch_operands = 0 : i64, tpu.core_type = #tpu.core_type<tc>, window_params = [{pipeline_mode = #tpu.pipeline_mode<synchronous>, transform_indices = @transform_0, window_bounds = array<i64: 4, 16>}, {pipeline_mode = #tpu.pipeline_mode<synchronous>, transform_indices = @transform_1, window_bounds = array<i64: 1, 808>}, {pipeline_mode = #tpu.pipeline_mode<synchronous>, transform_indices = @transform_2, window_bounds = array<i64: 1, 808>}, {pipeline_mode = #tpu.pipeline_mode<synchronous>, transform_indices = @transform_3, window_bounds = array<i64: 1, 808>}, {pipeline_mode = #tpu.pipeline_mode<synchronous>, transform_indices = @transform_4, window_bounds = array<i64: 32, 16>}, {pipeline_mode = #tpu.pipeline_mode<synchronous>, transform_indices = @transform_5, window_bounds = array<i64: 32, 16>}, {pipeline_mode = #tpu.pipeline_mode<synchronous>, transform_indices = @transform_6, window_bounds = array<i64: 32, 16>}, {pipeline_mode = #tpu.pipeline_mode<synchronous>, transform_indices = @transform_7, window_bounds = array<i64: 1, 32>}, {pipeline_mode = #tpu.pipeline_mode<synchronous>, transform_indices = @transform_8, window_bounds = array<i64: 1, 32>}, {pipeline_mode = #tpu.pipeline_mode<synchronous>, transform_indices = @transform_9, window_bounds = array<i64: 1, 32>}, {pipeline_mode = #tpu.pipeline_mode<synchronous>, transform_indices = @transform_10, window_bounds = array<i64: 8, 32>}, {pipeline_mode = #tpu.pipeline_mode<synchronous>, transform_indices = @transform_11, window_bounds = array<i64: 8, 32>}, {pipeline_mode = #tpu.pipeline_mode<synchronous>, transform_indices = @transform_12, window_bounds = array<i64: 8, 32>}, {pipeline_mode = #tpu.pipeline_mode<synchronous>, transform_indices = @transform_13, window_bounds = array<i64: 1, 8>}, {pipeline_mode = #tpu.pipeline_mode<synchronous>, transform_indices = @transform_14, window_bounds = array<i64: 1, 8>}, {pipeline_mode = #tpu.pipeline_mode<synchronous>, transform_indices = @transform_15, window_bounds = array<i64: 1, 8>}, {pipeline_mode = #tpu.pipeline_mode<synchronous>, transform_indices = @transform_16, window_bounds = array<i64: 4, 8>}, {pipeline_mode = #tpu.pipeline_mode<synchronous>, transform_indices = @transform_17, window_bounds = array<i64: 1, 808>}]} {
    %c0 = arith.constant 0 : index
    %c0_0 = arith.constant 0 : index
    %0 = vector.load %arg2[%c0, %c0_0] : memref<1x808xf32, #tpu.memory_space<vmem>>, vector<1x808xf32>
    %c0_1 = arith.constant 0 : index
    %c0_2 = arith.constant 0 : index
    %1 = vector.load %arg3[%c0_1, %c0_2] : memref<1x808xf32, #tpu.memory_space<vmem>>, vector<1x808xf32>
    %2 = math.exp %1 : vector<1x808xf32>
    %c0_3 = arith.constant 0 : index
    %c0_4 = arith.constant 0 : index
    %3 = vector.load %arg4[%c0_3, %c0_4] : memref<1x808xf32, #tpu.memory_space<vmem>>, vector<1x808xf32>
    %4 = arith.mulf %2, %3 : vector<1x808xf32>
    %5 = arith.addf %0, %4 : vector<1x808xf32>
    %c0_5 = arith.constant 0 : index
    %c0_6 = arith.constant 0 : index
    %6 = vector.load %arg18[%c0_5, %c0_6] : memref<1x808xf32, #tpu.memory_space<vmem>>, vector<1x808xf32>
    tpu.vector_store %arg18[%c0_5, %c0_6], %5 {strides = array<i32>} : memref<1x808xf32, #tpu.memory_space<vmem>>, vector<1x808xf32>,
    %c0_7 = arith.constant 0 : index
    %c0_8 = arith.constant 0 : index
    %7 = vector.load %arg1[%c0_7, %c0_8] : memref<4x16xf32, #tpu.memory_space<vmem>>, vector<4x16xf32>
    %c0_9 = arith.constant 0 : index
    %c0_10 = arith.constant 0 : index
    %8 = vector.load %arg5[%c0_9, %c0_10] : memref<32x16xf32, #tpu.memory_space<vmem>>, vector<32x16xf32>
    %c0_11 = arith.constant 0 : index
    %c0_12 = arith.constant 0 : index
    %9 = vector.load %arg6[%c0_11, %c0_12] : memref<32x16xf32, #tpu.memory_space<vmem>>, vector<32x16xf32>
    %10 = math.exp %9 : vector<32x16xf32>
    %c0_13 = arith.constant 0 : index
    %c0_14 = arith.constant 0 : index
    %11 = vector.load %arg7[%c0_13, %c0_14] : memref<32x16xf32, #tpu.memory_space<vmem>>, vector<32x16xf32>
    %12 = arith.mulf %10, %11 : vector<32x16xf32>
    %13 = arith.addf %8, %12 : vector<32x16xf32>
    %c0_15 = arith.constant 0 : index
    %c0_16 = arith.constant 0 : index
    %14 = vector.load %arg8[%c0_15, %c0_16] : memref<1x32xf32, #tpu.memory_space<vmem>>, vector<1x32xf32>
    %c0_17 = arith.constant 0 : index
    %c0_18 = arith.constant 0 : index
    %15 = vector.load %arg9[%c0_17, %c0_18] : memref<1x32xf32, #tpu.memory_space<vmem>>, vector<1x32xf32>
    %16 = math.exp %15 : vector<1x32xf32>
    %c0_19 = arith.constant 0 : index
    %c0_20 = arith.constant 0 : index
    %17 = vector.load %arg10[%c0_19, %c0_20] : memref<1x32xf32, #tpu.memory_space<vmem>>, vector<1x32xf32>
    %18 = arith.mulf %16, %17 : vector<1x32xf32>
    %19 = arith.addf %14, %18 : vector<1x32xf32>
    %cst = arith.constant dense<0.000000e+00> : vector<4x32xf32>
    %20 = tpu.matmul %7, %13, %cst {dimension_numbers = #tpu.dot_dimension_numbers<[1], [1], [0], [0], [0, 0, 1, 0], [], []>} : vector<4x16xf32>, vector<32x16xf32>, vector<4x32xf32> -> vector<4x32xf32>
    %21 = vector.broadcast %19 : vector<1x32xf32> to vector<4x32xf32>
    %22 = arith.addf %20, %21 : vector<4x32xf32>
    %cst_21 = arith.constant 0.000000e+00 : f32
    %23 = vector.broadcast %cst_21 : f32 to vector<4x32xf32>
    %24 = arith.maximumf %22, %23 : vector<4x32xf32>
    %c0_22 = arith.constant 0 : index
    %c0_23 = arith.constant 0 : index
    %25 = vector.load %arg11[%c0_22, %c0_23] : memref<8x32xf32, #tpu.memory_space<vmem>>, vector<8x32xf32>
    %c0_24 = arith.constant 0 : index
    %c0_25 = arith.constant 0 : index
    %26 = vector.load %arg12[%c0_24, %c0_25] : memref<8x32xf32, #tpu.memory_space<vmem>>, vector<8x32xf32>
    %27 = math.exp %26 : vector<8x32xf32>
    %c0_26 = arith.constant 0 : index
    %c0_27 = arith.constant 0 : index
    %28 = vector.load %arg13[%c0_26, %c0_27] : memref<8x32xf32, #tpu.memory_space<vmem>>, vector<8x32xf32>
    %29 = arith.mulf %27, %28 : vector<8x32xf32>
    %30 = arith.addf %25, %29 : vector<8x32xf32>
    %c0_28 = arith.constant 0 : index
    %c0_29 = arith.constant 0 : index
    %31 = vector.load %arg14[%c0_28, %c0_29] : memref<1x8xf32, #tpu.memory_space<vmem>>, vector<1x8xf32>
    %c0_30 = arith.constant 0 : index
    %c0_31 = arith.constant 0 : index
    %32 = vector.load %arg15[%c0_30, %c0_31] : memref<1x8xf32, #tpu.memory_space<vmem>>, vector<1x8xf32>
    %33 = math.exp %32 : vector<1x8xf32>
    %c0_32 = arith.constant 0 : index
    %c0_33 = arith.constant 0 : index
    %34 = vector.load %arg16[%c0_32, %c0_33] : memref<1x8xf32, #tpu.memory_space<vmem>>, vector<1x8xf32>
    %35 = arith.mulf %33, %34 : vector<1x8xf32>
    %36 = arith.addf %31, %35 : vector<1x8xf32>
    %cst_34 = arith.constant dense<0.000000e+00> : vector<4x8xf32>
    %37 = tpu.matmul %24, %30, %cst_34 {dimension_numbers = #tpu.dot_dimension_numbers<[1], [1], [0], [0], [0, 0, 1, 0], [], []>} : vector<4x32xf32>, vector<8x32xf32>, vector<4x8xf32> -> vector<4x8xf32>
    %38 = vector.broadcast %36 : vector<1x8xf32> to vector<4x8xf32>
    %39 = arith.addf %37, %38 : vector<4x8xf32>
    %c0_35 = arith.constant 0 : index
    %c0_36 = arith.constant 0 : index
    %40 = vector.load %arg17[%c0_35, %c0_36] : memref<4x8xf32, #tpu.memory_space<vmem>>, vector<4x8xf32>
    tpu.vector_store %arg17[%c0_35, %c0_36], %39 {strides = array<i32>} : memref<4x8xf32, #tpu.memory_space<vmem>>, vector<4x8xf32>,
    return
  }
  func.func @transform_0(%arg0: i32) -> (i32, i32) {
    %c0_i32 = arith.constant 0 : i32
    %c0_i32_0 = arith.constant 0 : i32
    %c0_i32_1 = arith.constant 0 : i32
    return %c0_i32, %c0_i32_0 : i32, i32
  }
  func.func @transform_1(%arg0: i32) -> (i32, i32) {
    %c0_i32 = arith.constant 0 : i32
    %c0_i32_0 = arith.constant 0 : i32
    %c0_i32_1 = arith.constant 0 : i32
    return %c0_i32, %c0_i32_0 : i32, i32
  }
  func.func @transform_2(%arg0: i32) -> (i32, i32) {
    %c0_i32 = arith.constant 0 : i32
    %c0_i32_0 = arith.constant 0 : i32
    %c0_i32_1 = arith.constant 0 : i32
    return %c0_i32, %c0_i32_0 : i32, i32
  }
  func.func @transform_3(%arg0: i32) -> (i32, i32) {
    %c0_i32 = arith.constant 0 : i32
    %c0_i32_0 = arith.constant 0 : i32
    %c0_i32_1 = arith.constant 0 : i32
    return %c0_i32, %c0_i32_0 : i32, i32
  }
  func.func @transform_4(%arg0: i32) -> (i32, i32) {
    %c0_i32 = arith.constant 0 : i32
    %c0_i32_0 = arith.constant 0 : i32
    %c0_i32_1 = arith.constant 0 : i32
    return %c0_i32, %c0_i32_0 : i32, i32
  }
  func.func @transform_5(%arg0: i32) -> (i32, i32) {
    %c0_i32 = arith.constant 0 : i32
    %c0_i32_0 = arith.constant 0 : i32
    %c0_i32_1 = arith.constant 0 : i32
    return %c0_i32, %c0_i32_0 : i32, i32
  }
  func.func @transform_6(%arg0: i32) -> (i32, i32) {
    %c0_i32 = arith.constant 0 : i32
    %c0_i32_0 = arith.constant 0 : i32
    %c0_i32_1 = arith.constant 0 : i32
    return %c0_i32, %c0_i32_0 : i32, i32
  }
  func.func @transform_7(%arg0: i32) -> (i32, i32) {
    %c0_i32 = arith.constant 0 : i32
    %c0_i32_0 = arith.constant 0 : i32
    %c0_i32_1 = arith.constant 0 : i32
    return %c0_i32, %c0_i32_0 : i32, i32
  }
  func.func @transform_8(%arg0: i32) -> (i32, i32) {
    %c0_i32 = arith.constant 0 : i32
    %c0_i32_0 = arith.constant 0 : i32
    %c0_i32_1 = arith.constant 0 : i32
    return %c0_i32, %c0_i32_0 : i32, i32
  }
  func.func @transform_9(%arg0: i32) -> (i32, i32) {
    %c0_i32 = arith.constant 0 : i32
    %c0_i32_0 = arith.constant 0 : i32
    %c0_i32_1 = arith.constant 0 : i32
    return %c0_i32, %c0_i32_0 : i32, i32
  }
  func.func @transform_10(%arg0: i32) -> (i32, i32) {
    %c0_i32 = arith.constant 0 : i32
    %c0_i32_0 = arith.constant 0 : i32
    %c0_i32_1 = arith.constant 0 : i32
    return %c0_i32, %c0_i32_0 : i32, i32
  }
  func.func @transform_11(%arg0: i32) -> (i32, i32) {
    %c0_i32 = arith.constant 0 : i32
    %c0_i32_0 = arith.constant 0 : i32
    %c0_i32_1 = arith.constant 0 : i32
    return %c0_i32, %c0_i32_0 : i32, i32
  }
  func.func @transform_12(%arg0: i32) -> (i32, i32) {
    %c0_i32 = arith.constant 0 : i32
    %c0_i32_0 = arith.constant 0 : i32
    %c0_i32_1 = arith.constant 0 : i32
    return %c0_i32, %c0_i32_0 : i32, i32
  }
  func.func @transform_13(%arg0: i32) -> (i32, i32) {
    %c0_i32 = arith.constant 0 : i32
    %c0_i32_0 = arith.constant 0 : i32
    %c0_i32_1 = arith.constant 0 : i32
    return %c0_i32, %c0_i32_0 : i32, i32
  }
  func.func @transform_14(%arg0: i32) -> (i32, i32) {
    %c0_i32 = arith.constant 0 : i32
    %c0_i32_0 = arith.constant 0 : i32
    %c0_i32_1 = arith.constant 0 : i32
    return %c0_i32, %c0_i32_0 : i32, i32
  }
  func.func @transform_15(%arg0: i32) -> (i32, i32) {
    %c0_i32 = arith.constant 0 : i32
    %c0_i32_0 = arith.constant 0 : i32
    %c0_i32_1 = arith.constant 0 : i32
    return %c0_i32, %c0_i32_0 : i32, i32
  }
  func.func @transform_16(%arg0: i32) -> (i32, i32) {
    %c0_i32 = arith.constant 0 : i32
    %c0_i32_0 = arith.constant 0 : i32
    %c0_i32_1 = arith.constant 0 : i32
    return %c0_i32, %c0_i32_0 : i32, i32
  }
  func.func @transform_17(%arg0: i32) -> (i32, i32) {
    %c0_i32 = arith.constant 0 : i32
    %c0_i32_0 = arith.constant 0 : i32
    %c0_i32_1 = arith.constant 0 : i32
    return %c0_i32, %c0_i32_0 : i32, i32
  }
}

</mosaic_0001>

<llo_original>
// kernel: _bnn_wrapper_forward_jit.1
$region0: #{_bnn_wrapper_forward_jit.1}
  #allocation0 [shape = 'u32[]', space=smem, size = 0x4, offset = 0x4, fixed_abs, tag = 'smem constant byte address 0x4 - core index']
  #allocation1 [shape = 'u32[72,128]{1,0:T(1,128)}', space=vmem, size = 0x9000, scoped, tag = 'internal scratch']
  %s0 = inlined_call_operand.vmem [shape: f32[4,16], index: 0, kind: input, shape index: {}]
  %s1 = inlined_call_operand.vmem [shape: f32[1,808], index: 1, kind: input, shape index: {}]
  %s2 = inlined_call_operand.vmem [shape: f32[1,808], index: 2, kind: input, shape index: {}]
  %s3 = inlined_call_operand.vmem [shape: f32[1,808], index: 3, kind: input, shape index: {}]
  %s4 = inlined_call_operand.vmem [shape: f32[32,16], index: 4, kind: input, shape index: {}]
  %s5 = inlined_call_operand.vmem [shape: f32[32,16], index: 5, kind: input, shape index: {}]
  %s6 = inlined_call_operand.vmem [shape: f32[32,16], index: 6, kind: input, shape index: {}]
  %s7 = inlined_call_operand.vmem [shape: f32[1,32], index: 7, kind: input, shape index: {}]
  %s8 = inlined_call_operand.vmem [shape: f32[1,32], index: 8, kind: input, shape index: {}]
  %s9 = inlined_call_operand.vmem [shape: f32[1,32], index: 9, kind: input, shape index: {}]
  %s10 = inlined_call_operand.vmem [shape: f32[8,32], index: 10, kind: input, shape index: {}]
  %s11 = inlined_call_operand.vmem [shape: f32[8,32], index: 11, kind: input, shape index: {}]
  %s12 = inlined_call_operand.vmem [shape: f32[8,32], index: 12, kind: input, shape index: {}]
  %s13 = inlined_call_operand.vmem [shape: f32[1,8], index: 13, kind: input, shape index: {}]
  %s14 = inlined_call_operand.vmem [shape: f32[1,8], index: 14, kind: input, shape index: {}]
  %s15 = inlined_call_operand.vmem [shape: f32[1,8], index: 15, kind: input, shape index: {}]
  %s16 = inlined_call_operand.hbm [shape: f32[4,8], index: 16, kind: output, shape index: {0}]
  %s17 = inlined_call_operand.hbm [shape: f32[1,808], index: 17, kind: output, shape index: {1}]
  %18 = xla_tuple %s16, %s17
  %s19 = sld [smem:[#allocation0]]
  $region82: #{_bnn_wrapper_forward_jit.1} parent=0
    _
  %s21 = ssub.s32 1, %s19
  %s22 = scalar_select 0, %s21, %s19
  $region1: #{_bnn_wrapper_forward_jit.1} parent=0
    #allocation2 [shape = 'u8[2048]{0}', space=vmem, size = 0x800, scoped, tag = 'output window, operand 0, single buffered']
    #allocation3 [shape = 's32[1]{0}', space=sflag, size = 0x4, scoped, tag = 'scoped memory for _bnn_wrapper_forward_jit.1']
    #allocation4 [shape = 'u8[3584]{0}', space=vmem, size = 0x1000, scoped, tag = 'output window, operand 1, single buffered']
    #allocation5 [shape = 's32[1]{0}', space=sflag, size = 0x4, scoped, tag = 'scoped memory for _bnn_wrapper_forward_jit.1']
    %23 = vsyncpa [#allocation3], 0
    %24 = vsyncpa [#allocation5], 0
    // Predicated region
    $region2: #{_bnn_wrapper_forward_jit.1} parent=1 // pred_check
      _
    $region3: #{_bnn_wrapper_forward_jit.1} parent=1 // pred_check_branch
      %26 = sbr.rel (0) target = $region5
    $region4: #{_bnn_wrapper_forward_jit.1} parent=1 // pred_region
      _
    $region5: #{_bnn_wrapper_forward_jit.1} parent=1 // pred_fallthru
      _
    // Predicated region
    $region6: #{_bnn_wrapper_forward_jit.1} parent=1 // pred_check
      _
    $region7: #{_bnn_wrapper_forward_jit.1} parent=1 // pred_check_branch
      %28 = sbr.rel (0) target = $region9
    $region8: #{_bnn_wrapper_forward_jit.1} parent=1 // pred_region
      _
    $region9: #{_bnn_wrapper_forward_jit.1} parent=1 // pred_fallthru
      _
    // Predicated region
    $region10: #{_bnn_wrapper_forward_jit.1} parent=1 // pred_check
      _
    $region11: #{_bnn_wrapper_forward_jit.1} parent=1 // pred_check_branch
      %30 = sbr.rel (0) target = $region13
    $region12: #{_bnn_wrapper_forward_jit.1} parent=1 // pred_region
      _
    $region13: #{_bnn_wrapper_forward_jit.1} parent=1 // pred_fallthru
      _
    // Predicated region
    $region14: #{_bnn_wrapper_forward_jit.1} parent=1 // pred_check
      _
    $region15: #{_bnn_wrapper_forward_jit.1} parent=1 // pred_check_branch
      %32 = sbr.rel (0) target = $region17
    $region16: #{_bnn_wrapper_forward_jit.1} parent=1 // pred_region
      _
    $region17: #{_bnn_wrapper_forward_jit.1} parent=1 // pred_fallthru
      _
    // Predicated region
    $region18: #{_bnn_wrapper_forward_jit.1} parent=1 // pred_check
      _
    $region19: #{_bnn_wrapper_forward_jit.1} parent=1 // pred_check_branch
      %34 = sbr.rel (0) target = $region21
    $region20: #{_bnn_wrapper_forward_jit.1} parent=1 // pred_region
      _
    $region21: #{_bnn_wrapper_forward_jit.1} parent=1 // pred_fallthru
      _
    // Predicated region
    $region22: #{_bnn_wrapper_forward_jit.1} parent=1 // pred_check
      _
    $region23: #{_bnn_wrapper_forward_jit.1} parent=1 // pred_check_branch
      %36 = sbr.rel (0) target = $region25
    $region24: #{_bnn_wrapper_forward_jit.1} parent=1 // pred_region
      _
    $region25: #{_bnn_wrapper_forward_jit.1} parent=1 // pred_fallthru
      _
    // Predicated region
    $region26: #{_bnn_wrapper_forward_jit.1} parent=1 // pred_check
      _
    $region27: #{_bnn_wrapper_forward_jit.1} parent=1 // pred_check_branch
      %38 = sbr.rel (0) target = $region29
    $region28: #{_bnn_wrapper_forward_jit.1} parent=1 // pred_region
      _
    $region29: #{_bnn_wrapper_forward_jit.1} parent=1 // pred_fallthru
      _
    // Predicated region
    $region30: #{_bnn_wrapper_forward_jit.1} parent=1 // pred_check
      _
    $region31: #{_bnn_wrapper_forward_jit.1} parent=1 // pred_check_branch
      %40 = sbr.rel (0) target = $region33
    $region32: #{_bnn_wrapper_forward_jit.1} parent=1 // pred_region
      _
    $region33: #{_bnn_wrapper_forward_jit.1} parent=1 // pred_fallthru
      _
    // Predicated region
    $region34: #{_bnn_wrapper_forward_jit.1} parent=1 // pred_check
      _
    $region35: #{_bnn_wrapper_forward_jit.1} parent=1 // pred_check_branch
      %42 = sbr.rel (0) target = $region37
    $region36: #{_bnn_wrapper_forward_jit.1} parent=1 // pred_region
      _
    $region37: #{_bnn_wrapper_forward_jit.1} parent=1 // pred_fallthru
      _
    // Predicated region
    $region38: #{_bnn_wrapper_forward_jit.1} parent=1 // pred_check
      _
    $region39: #{_bnn_wrapper_forward_jit.1} parent=1 // pred_check_branch
      %44 = sbr.rel (0) target = $region41
    $region40: #{_bnn_wrapper_forward_jit.1} parent=1 // pred_region
      _
    $region41: #{_bnn_wrapper_forward_jit.1} parent=1 // pred_fallthru
      _
    // Predicated region
    $region42: #{_bnn_wrapper_forward_jit.1} parent=1 // pred_check
      _
    $region43: #{_bnn_wrapper_forward_jit.1} parent=1 // pred_check_branch
      %46 = sbr.rel (0) target = $region45
    $region44: #{_bnn_wrapper_forward_jit.1} parent=1 // pred_region
      _
    $region45: #{_bnn_wrapper_forward_jit.1} parent=1 // pred_fallthru
      _
    // Predicated region
    $region46: #{_bnn_wrapper_forward_jit.1} parent=1 // pred_check
      _
    $region47: #{_bnn_wrapper_forward_jit.1} parent=1 // pred_check_branch
      %48 = sbr.rel (0) target = $region49
    $region48: #{_bnn_wrapper_forward_jit.1} parent=1 // pred_region
      _
    $region49: #{_bnn_wrapper_forward_jit.1} parent=1 // pred_fallthru
      _
    // Predicated region
    $region50: #{_bnn_wrapper_forward_jit.1} parent=1 // pred_check
      _
    $region51: #{_bnn_wrapper_forward_jit.1} parent=1 // pred_check_branch
      %50 = sbr.rel (0) target = $region53
    $region52: #{_bnn_wrapper_forward_jit.1} parent=1 // pred_region
      _
    $region53: #{_bnn_wrapper_forward_jit.1} parent=1 // pred_fallthru
      _
    // Predicated region
    $region54: #{_bnn_wrapper_forward_jit.1} parent=1 // pred_check
      _
    $region55: #{_bnn_wrapper_forward_jit.1} parent=1 // pred_check_branch
      %52 = sbr.rel (0) target = $region57
    $region56: #{_bnn_wrapper_forward_jit.1} parent=1 // pred_region
      _
    $region57: #{_bnn_wrapper_forward_jit.1} parent=1 // pred_fallthru
      _
    // Predicated region
    $region58: #{_bnn_wrapper_forward_jit.1} parent=1 // pred_check
      _
    $region59: #{_bnn_wrapper_forward_jit.1} parent=1 // pred_check_branch
      %54 = sbr.rel (0) target = $region61
    $region60: #{_bnn_wrapper_forward_jit.1} parent=1 // pred_region
      _
    $region61: #{_bnn_wrapper_forward_jit.1} parent=1 // pred_fallthru
      _
    // Predicated region
    $region62: #{_bnn_wrapper_forward_jit.1} parent=1 // pred_check
      _
    $region63: #{_bnn_wrapper_forward_jit.1} parent=1 // pred_check_branch
      %56 = sbr.rel (0) target = $region65
    $region64: #{_bnn_wrapper_forward_jit.1} parent=1 // pred_region
      _
    $region65: #{_bnn_wrapper_forward_jit.1} parent=1 // pred_fallthru
      _
    %v57 = vld [vmem:[%s1] sm:$0x7f]
    %v58 = vld [vmem:[%s2] sm:$0x7f]
    %v59 = vmul.f32 %v58, 1.442695
    %v60 = vpow.pop %v59
    %v61 = vld [vmem:[%s3] sm:$0x7f]
    %v62 = vmul.f32 %v60, %v61
    %v63 = vadd.f32 %v57, %v62
    %v64 = vlaneseq
    %vm65 = vcmp.ge.s32.totalorder %v64, 0
    %vm66 = vcmp.lt.s32.totalorder %v64, 808
    %vm67 = vmand %vm65, %vm66
    %68 = vst.msk [vmem:[#allocation4] sm:$0x7f] %vm67, %v63
    %v69 = vld [vmem:[%s0] sm:$0xf]
    %v70 = vld [vmem:[%s4] sm:$0xff]
    %v71 = vld [vmem:[%s4 + $0x8] sm:$0xff]
    %v72 = vld [vmem:[%s4 + $0x10] sm:$0xff]
    %v73 = vld [vmem:[%s4 + $0x18] sm:$0xff]
    %v74 = vld [vmem:[%s5] sm:$0xff]
    %v75 = vld [vmem:[%s5 + $0x8] sm:$0xff]
    %v76 = vld [vmem:[%s5 + $0x10] sm:$0xff]
    %v77 = vld [vmem:[%s5 + $0x18] sm:$0xff]
    %v78 = vmul.f32 %v74, 1.442695
    %v79 = vpow.pop %v78
    %v80 = vmul.f32 %v75, 1.442695
    %v81 = vpow.pop %v80
    %v82 = vmul.f32 %v76, 1.442695
    %v83 = vpow.pop %v82
    %v84 = vmul.f32 %v77, 1.442695
    %v85 = vpow.pop %v84
    %v86 = vld [vmem:[%s6] sm:$0xff]
    %v87 = vld [vmem:[%s6 + $0x8] sm:$0xff]
    %v88 = vld [vmem:[%s6 + $0x10] sm:$0xff]
    %v89 = vld [vmem:[%s6 + $0x18] sm:$0xff]
    %v90 = vmul.f32 %v79, %v86
    %v91 = vmul.f32 %v81, %v87
    %v92 = vmul.f32 %v83, %v88
    %v93 = vmul.f32 %v85, %v89
    %v94 = vadd.f32 %v70, %v90
    %v95 = vadd.f32 %v71, %v91
    %v96 = vadd.f32 %v72, %v92
    %v97 = vadd.f32 %v73, %v93
    %v98 = vld [vmem:[%s7] sm:$0x1]
    %v99 = vld [vmem:[%s8] sm:$0x1]
    %v100 = vmul.f32 %v99, 1.442695
    %v101 = vpow.pop %v100
    %v102 = vld [vmem:[%s9] sm:$0x1]
    %v103 = vmul.f32 %v101, %v102
    %v104 = vadd.f32 %v98, %v103
    %v106 = vperm.slane %v104, 0
    %vm108 = vcmask 130048
    %v110 = vsel %vm108, %v69, 0
    %v113 = vsel %vm108, %v94, 0
    %v116 = vsel %vm108, %v95, 0
    %v119 = vsel %vm108, %v96, 0
    %v122 = vsel %vm108, %v97, 0
    %124 = vmatpush.xpose.msra.mxu0 0.0
    %125 = vmatpush.xpose.msra.mxu0 0.0
    %126 = vmatpush.xpose.msra.mxu0 0.0
    %127 = vmatpush.xpose.msra.mxu0 0.0
    %128 = vmatpush.xpose.msra.mxu0 0.0
    %129 = vmatpush.xpose.msra.mxu0 0.0
    %130 = vmatpush.xpose.msra.mxu0 0.0
    %131 = vmatpush.xpose.msra.mxu0 0.0
    %132 = vmatpush.xpose.msra.mxu0 0.0
    %133 = vmatpush.xpose.msra.mxu0 0.0
    %134 = vmatpush.xpose.msra.mxu0 0.0
    %135 = vmatpush.xpose.msra.mxu0 0.0
    %136 = vmatpush.xpose.msra.mxu0 %v122
    %137 = vmatpush.xpose.msra.mxu0 %v119
    %138 = vmatpush.xpose.msra.mxu0 %v116
    %139 = vmatpush.xpose.msra.mxu0 %v113
    %140 = vmatmul.f32.gmra.mxu0 %v110
    %v141 = vpop.f32.mrf.mxu0
    %v142 = vadd.f32 %v106, %v141
    %143 = vdwg.mxu0
    %v144 = vmax.f32 %v142, 0.0
    %v145 = vld [vmem:[%s10] sm:$0xff]
    %v146 = vld [vmem:[%s11] sm:$0xff]
    %v147 = vmul.f32 %v146, 1.442695
    %v148 = vpow.pop %v147
    %v149 = vld [vmem:[%s12] sm:$0xff]
    %v150 = vmul.f32 %v148, %v149
    %v151 = vadd.f32 %v145, %v150
    %v152 = vld [vmem:[%s13] sm:$0x1]
    %v153 = vld [vmem:[%s14] sm:$0x1]
    %v154 = vmul.f32 %v153, 1.442695
    %v155 = vpow.pop %v154
    %v156 = vld [vmem:[%s15] sm:$0x1]
    %v157 = vmul.f32 %v155, %v156
    %v158 = vadd.f32 %v152, %v157
    %v160 = vperm.slane %v158, 0
    %vm162 = vcmask 261120
    %v164 = vsel %vm162, %v144, 0
    %v167 = vsel %vm162, %v151, 0
    %169 = vmatpush.xpose.msra.mxu0 0.0
    %170 = vmatpush.xpose.msra.mxu0 0.0
    %171 = vmatpush.xpose.msra.mxu0 0.0
    %172 = vmatpush.xpose.msra.mxu0 0.0
    %173 = vmatpush.xpose.msra.mxu0 0.0
    %174 = vmatpush.xpose.msra.mxu0 0.0
    %175 = vmatpush.xpose.msra.mxu0 0.0
    %176 = vmatpush.xpose.msra.mxu0 0.0
    %177 = vmatpush.xpose.msra.mxu0 0.0
    %178 = vmatpush.xpose.msra.mxu0 0.0
    %179 = vmatpush.xpose.msra.mxu0 0.0
    %180 = vmatpush.xpose.msra.mxu0 0.0
    %181 = vmatpush.xpose.msra.mxu0 0.0
    %182 = vmatpush.xpose.msra.mxu0 0.0
    %183 = vmatpush.xpose.msra.mxu0 0.0
    %184 = vmatpush.xpose.msra.mxu0 %v167
    %185 = vmatmul.f32.gmra.mxu0 %v164
    %v186 = vpop.f32.mrf.mxu0
    %v187 = vadd.f32 %v160, %v186
    %188 = vdwg.mxu0
    %vm189 = vcmask 60416
    %190 = vst.msk [vmem:[#allocation2] sm:$0xf] %vm189, %v187
    // Predicated region
    $region66: #{_bnn_wrapper_forward_jit.1} parent=1 // pred_check
      _
    $region67: #{_bnn_wrapper_forward_jit.1} parent=1 // pred_check_branch
      %192 = sbr.rel (0) target = $region69
    $region68: #{_bnn_wrapper_forward_jit.1} parent=1 // pred_region
      %194 = vsyncadd [#allocation3], 0
      %s196 = sshll.u32 [#allocation2], 4
      %s197 = int_to_ptr.vmem [resolvable:$true] %s196
      %s198 = sshll.u32 %s16, 4
      %s199 = int_to_ptr.hbm [resolvable:$true] %s198
      %201 = dma.vmem_to_hbm [thread:$0]  %s197, 64, %s199, [#allocation3]
    $region69: #{_bnn_wrapper_forward_jit.1} parent=1 // pred_fallthru
      _
    // Predicated region
    $region70: #{_bnn_wrapper_forward_jit.1} parent=1 // pred_check
      _
    $region71: #{_bnn_wrapper_forward_jit.1} parent=1 // pred_check_branch
      %203 = sbr.rel (0) target = $region73
    $region72: #{_bnn_wrapper_forward_jit.1} parent=1 // pred_region
      %205 = vsyncadd [#allocation5], 0
      %s207 = sshll.u32 [#allocation4], 4
      %s208 = int_to_ptr.vmem [resolvable:$true] %s207
      %s209 = sshll.u32 %s17, 4
      %s210 = int_to_ptr.hbm [resolvable:$true] %s209
      %212 = dma.vmem_to_hbm [thread:$0]  %s208, 112, %s210, [#allocation5]
    $region73: #{_bnn_wrapper_forward_jit.1} parent=1 // pred_fallthru
      _
    // Predicated region
    $region74: #{_bnn_wrapper_forward_jit.1} parent=1 // pred_check
      _
    $region75: #{_bnn_wrapper_forward_jit.1} parent=1 // pred_check_branch
      %214 = sbr.rel (0) target = $region77
    $region76: #{_bnn_wrapper_forward_jit.1} parent=1 // pred_region
      %216 = dma.done [#allocation3], 64
    $region77: #{_bnn_wrapper_forward_jit.1} parent=1 // pred_fallthru
      _
    // Predicated region
    $region78: #{_bnn_wrapper_forward_jit.1} parent=1 // pred_check
      _
    $region79: #{_bnn_wrapper_forward_jit.1} parent=1 // pred_check_branch
      %218 = sbr.rel (0) target = $region81
    $region80: #{_bnn_wrapper_forward_jit.1} parent=1 // pred_region
      %220 = dma.done [#allocation5], 112
    $region81: #{_bnn_wrapper_forward_jit.1} parent=1 // pred_fallthru
      _
    %221 = vsyncpa [#allocation3], 1
    %222 = vsyncpa [#allocation5], 1

</llo_original>
